<compile_context>
chip_gen: v7x
topology: tpu7x:2x2x1
jax: 0.10.0
libtpu: 0.0.40
codegen_flags: <defaults>
</compile_context>

<pallas_src>
import jax
import jax.numpy as jnp
from jax.experimental import pallas as pl
from jax.experimental.pallas import tpu as pltpu

LANES = 128
MAX_TILE_BYTES = 2 * 1024 * 1024   # ~2 MiB of data per input tile


def _make_l1_sum_kernel(rows, block_rows, needs_mask, native_compute):
    """Accumulate sum(|x - y|) into a resident (8, 128) f32 output block."""
    groups = block_rows // 8

    def accumulate(out_ref, a):
        # (block_rows, 128) -> (groups, 8, 128) is layout-preserving (each
        # (8, 128) slice is exactly one vreg tile); sum over axis 0 is pure
        # VPU adds, no cross-lane / cross-sublane movement.
        out_ref[...] += a.reshape(groups, 8, LANES).sum(axis=0)

    def kernel(x_ref, y_ref, out_ref):
        i = pl.program_id(0)

        @pl.when(i == 0)
        def _():
            out_ref[...] = jnp.zeros_like(out_ref)

        if native_compute:
            # sub/abs in the input dtype (bf16 stays bf16 on the VPU);
            # widen to f32 only for the accumulation.
            a = jnp.abs(x_ref[...] - y_ref[...]).astype(jnp.float32)
        else:
            a = jnp.abs(x_ref[...].astype(jnp.float32)
                        - y_ref[...].astype(jnp.float32))

        if needs_mask:
            last = pl.num_programs(0) - 1

            # Interior blocks: no mask, bare accumulate.
            @pl.when(i < last)
            def _():
                accumulate(out_ref, a)

            # Only the partial edge block pays the iota/compare/select tax.
            @pl.when(i == last)
            def _():
                row_ids = i * block_rows + jax.lax.broadcasted_iota(
                    jnp.int32, (block_rows, LANES), 0)
                accumulate(out_ref, jnp.where(row_ids < rows, a, 0.0))
        else:
            accumulate(out_ref, a)

    return kernel


def l1_loss(x, y, normalizer=None):
    """Pallas implementation of L1Loss.forward(x, y, normalizer)."""
    assert x.shape == y.shape, "x and y must have the same shape"
    n = x.size

    xf = x.reshape(-1)
    yf = y.reshape(-1)

    itemsize = x.dtype.itemsize
    # ~2 MiB per input tile, dtype-aware, multiple of 8 sublanes.
    max_block_rows = max(8, (MAX_TILE_BYTES // (LANES * itemsize)) // 8 * 8)

    rows = n // LANES                      # number of full 128-lane rows
    n_main = rows * LANES if rows >= 8 else 0

    total = jnp.zeros((), jnp.float32)

    if n_main:
        if n_main == n:                    # common case: zero-copy reshape
            x2d = xf.reshape(rows, LANES)
            y2d = yf.reshape(rows, LANES)
        else:                              # ragged: slice off the tiny tail
            x2d = xf[:n_main].reshape(rows, LANES)
            y2d = yf[:n_main].reshape(rows, LANES)

        block_rows = min(max_block_rows, (rows // 8) * 8)
        num_blocks = pl.cdiv(rows, block_rows)
        needs_mask = (rows % block_rows) != 0
        native = (x.dtype == jnp.float32) or (x.dtype == jnp.bfloat16)

        partials = pl.pallas_call(
            _make_l1_sum_kernel(rows, block_rows, needs_mask, native),
            out_shape=jax.ShapeDtypeStruct((8, LANES), jnp.float32),
            grid=(num_blocks,),
            in_specs=[
                pl.BlockSpec((block_rows, LANES), lambda i: (i, 0)),
                pl.BlockSpec((block_rows, LANES), lambda i: (i, 0)),
            ],
            # One resident (8, 128) accumulator block across the whole grid.
            out_specs=pl.BlockSpec((8, LANES), lambda i: (0, 0)),
            compiler_params=pltpu.CompilerParams(
                dimension_semantics=("arbitrary",),
                vmem_limit_bytes=32 * 1024 * 1024),
            cost_estimate=pl.CostEstimate(
                flops=3 * n_main,
                transcendentals=0,
                bytes_accessed=2 * n_main * itemsize + 8 * LANES * 4),
        )(x2d, y2d)
        total = total + jnp.sum(partials)   # single small cross-lane reduce

    if n_main < n:
        # < 128-element tail (or tiny inputs): plain jnp, negligible cost.
        xt = xf[n_main:].astype(jnp.float32)
        yt = yf[n_main:].astype(jnp.float32)
        total = total + jnp.sum(jnp.abs(xt - yt))

    # NOTE: `normalizer` truthiness is evaluated in Python (matches the
    # PyTorch module); it must be a static None / number, not a traced value
    # (normalizer == 0 falls into the 'mean' branch, same as PyTorch's
    # `if not normalizer`).
    if not normalizer:
        return total / jnp.float32(n)
    return total / jnp.asarray(normalizer, jnp.float32)


if __name__ == "__main__":
    key = jax.random.PRNGKey(0)
    kx, ky, ka, kb = jax.random.split(key, 4)

    # Main case: NCHW feature maps, f32 (2048 elems = 16 lane-rows).
    x = jax.random.normal(kx, (2, 4, 16, 16), dtype=jnp.float32)
    y = jax.random.normal(ky, (2, 4, 16, 16), dtype=jnp.float32)

    loss_mean = l1_loss(x, y)
    loss_norm = l1_loss(x, y, normalizer=100.0)
    jax.block_until_ready(loss_mean)
    jax.block_until_ready(loss_norm)

    ref_mean = jnp.mean(jnp.abs(x - y))
    ref_norm = jnp.sum(jnp.abs(x - y)) / 100.0
    assert jnp.allclose(loss_mean, ref_mean, rtol=1e-5, atol=1e-6)
    assert jnp.allclose(loss_norm, ref_norm, rtol=1e-5, atol=1e-6)

    # Ragged case exercising the masked edge block + jnp tail:
    # 1500 elems -> 11 lane-rows (block_rows=8, masked edge) + 92-elem tail.
    xr = jax.random.normal(ka, (5, 300), dtype=jnp.float32)
    yr = jax.random.normal(kb, (5, 300), dtype=jnp.float32)
    loss_r = l1_loss(xr, yr)
    jax.block_until_ready(loss_r)
    assert jnp.allclose(loss_r, jnp.mean(jnp.abs(xr - yr)),
                        rtol=1e-5, atol=1e-6)

    # Tiny ragged case (105 elems, < 1 full lane-row): pure jnp tail path.
    xt = jax.random.normal(ka, (3, 5, 7), dtype=jnp.float32)
    yt = jax.random.normal(kb, (3, 5, 7), dtype=jnp.float32)
    loss_t = l1_loss(xt, yt)
    jax.block_until_ready(loss_t)
    assert jnp.allclose(loss_t, jnp.mean(jnp.abs(xt - yt)),
                        rtol=1e-5, atol=1e-6)

    # bf16 case: sub/abs run natively in bf16, accumulation in f32.
    xb = jax.random.normal(kx, (2, 4, 16, 16), dtype=jnp.bfloat16)
    yb = jax.random.normal(ky, (2, 4, 16, 16), dtype=jnp.bfloat16)
    loss_b = l1_loss(xb, yb)
    jax.block_until_ready(loss_b)
    ref_b = jnp.mean(jnp.abs(xb - yb).astype(jnp.float32))
    assert jnp.allclose(loss_b, ref_b, rtol=1e-4, atol=1e-5)

    print("KERNEL_OK")
</pallas_src>

<mosaic_0001>
module attributes {stable_mosaic.version = 11 : i64} {
  func.func @kernel(%arg0: i32, %arg1: memref<16x128xf32, #tpu.memory_space<vmem>>, %arg2: memref<16x128xf32, #tpu.memory_space<vmem>>, %arg3: memref<8x128xf32, #tpu.memory_space<vmem>>) attributes {dimension_semantics = [#tpu.dimension_semantics<arbitrary>], iteration_bounds = array<i64: 1>, scalar_prefetch = 0 : i64, scratch_operands = 0 : i64, tpu.core_type = #tpu.core_type<tc>, window_params = [{transform_indices = @transform_0, window_bounds = array<i64: 16, 128>}, {transform_indices = @transform_1, window_bounds = array<i64: 16, 128>}, {pipeline_mode = #tpu.pipeline_mode<synchronous>, transform_indices = @transform_2, window_bounds = array<i64: 8, 128>}]} {
    %c0_i32 = arith.constant 0 : i32
    %0 = arith.cmpi eq, %arg0, %c0_i32 : i32
    %1 = arith.extui %0 : i1 to i32
    %c0_i32_0 = arith.constant 0 : i32
    %2 = arith.cmpi ne, %1, %c0_i32_0 : i32
    scf.if %2 {
      %cst_8 = arith.constant 0.000000e+00 : f32
      %12 = vector.broadcast %cst_8 : f32 to vector<8x128xf32>
      %c0_9 = arith.constant 0 : index
      %c0_10 = arith.constant 0 : index
      %13 = vector.load %arg3[%c0_9, %c0_10] : memref<8x128xf32, #tpu.memory_space<vmem>>, vector<8x128xf32>
      tpu.vector_store %arg3[%c0_9, %c0_10], %12 {strides = array<i32>} : memref<8x128xf32, #tpu.memory_space<vmem>>, vector<8x128xf32>,
    } else {
    }
    %c0 = arith.constant 0 : index
    %c0_1 = arith.constant 0 : index
    %3 = vector.load %arg1[%c0, %c0_1] : memref<16x128xf32, #tpu.memory_space<vmem>>, vector<16x128xf32>
    %c0_2 = arith.constant 0 : index
    %c0_3 = arith.constant 0 : index
    %4 = vector.load %arg2[%c0_2, %c0_3] : memref<16x128xf32, #tpu.memory_space<vmem>>, vector<16x128xf32>
    %5 = arith.subf %3, %4 : vector<16x128xf32>
    %6 = math.absf %5 : vector<16x128xf32>
    %c0_4 = arith.constant 0 : index
    %c0_5 = arith.constant 0 : index
    %7 = vector.load %arg3[%c0_4, %c0_5] : memref<8x128xf32, #tpu.memory_space<vmem>>, vector<8x128xf32>
    %8 = vector.shape_cast %6 : vector<16x128xf32> to vector<2x8x128xf32>
    %cst = arith.constant dense<0.000000e+00> : vector<8x128xf32>
    %9 = vector.multi_reduction <add>, %8, %cst [0] : vector<2x8x128xf32> to vector<8x128xf32>
    %10 = arith.addf %7, %9 : vector<8x128xf32>
    %c0_6 = arith.constant 0 : index
    %c0_7 = arith.constant 0 : index
    %11 = vector.load %arg3[%c0_6, %c0_7] : memref<8x128xf32, #tpu.memory_space<vmem>>, vector<8x128xf32>
    tpu.vector_store %arg3[%c0_6, %c0_7], %10 {strides = array<i32>} : memref<8x128xf32, #tpu.memory_space<vmem>>, vector<8x128xf32>,
    return
  }
  func.func @transform_0(%arg0: i32) -> (i32, i32) {
    %c0_i32 = arith.constant 0 : i32
    %c0_i32_0 = arith.constant 0 : i32
    return %arg0, %c0_i32 : i32, i32
  }
  func.func @transform_1(%arg0: i32) -> (i32, i32) {
    %c0_i32 = arith.constant 0 : i32
    %c0_i32_0 = arith.constant 0 : i32
    return %arg0, %c0_i32 : i32, i32
  }
  func.func @transform_2(%arg0: i32) -> (i32, i32) {
    %c0_i32 = arith.constant 0 : i32
    %c0_i32_0 = arith.constant 0 : i32
    %c0_i32_1 = arith.constant 0 : i32
    return %c0_i32, %c0_i32_0 : i32, i32
  }
}

</mosaic_0001>

<llo_original>
// kernel: tpu_custom_call.1
$region0: #{tpu_custom_call.1}
  #allocation0 [shape = 'u32[]', space=smem, size = 0x4, offset = 0x4, fixed_abs, tag = 'smem constant byte address 0x4 - core index']
  #allocation1 [shape = 'u32[144,128]{1,0:T(1,128)}', space=vmem, size = 0x12000, scoped, tag = 'internal scratch']
  %s0 = inlined_call_operand.hbm [shape: f32[16,128], index: 0, kind: input, shape index: {}]
  %s1 = inlined_call_operand.hbm [shape: f32[16,128], index: 1, kind: input, shape index: {}]
  %s2 = inlined_call_operand.hbm [shape: f32[8,128], index: 2, kind: output, shape index: {}]
  %s3 = sld [smem:[#allocation0]]
  $region30: #{tpu_custom_call.1} parent=0
    _
  %s5 = ssub.s32 1, %s3
  %s6 = scalar_select 0, %s5, %s3
  $region1: #{tpu_custom_call.1} parent=0
    #allocation2 [shape = 'u8[8192]{0}', space=vmem, size = 0x2000, scoped, tag = 'input window, operand 0, single buffered']
    #allocation3 [shape = 's32[1]{0}', space=sflag, size = 0x4, scoped, tag = 'scoped memory for tpu_custom_call.1']
    #allocation4 [shape = 's32[1]{0}', space=sflag, size = 0x4, scoped, tag = 'scoped memory for tpu_custom_call.1']
    #allocation5 [shape = 'u8[8192]{0}', space=vmem, size = 0x2000, scoped, tag = 'input window, operand 1, single buffered']
    #allocation6 [shape = 's32[1]{0}', space=sflag, size = 0x4, scoped, tag = 'scoped memory for tpu_custom_call.1']
    #allocation7 [shape = 'u8[4096]{0}', space=vmem, size = 0x1000, scoped, tag = 'output window, operand 0, single buffered']
    %7 = vsyncpa [#allocation3], 0
    %8 = vsyncpa [#allocation6], 0
    %9 = vsyncpa [#allocation4], 0
    // Predicated region
    $region2: #{tpu_custom_call.1} parent=1 // pred_check
      _
    $region3: #{tpu_custom_call.1} parent=1 // pred_check_branch
      %11 = sbr.rel (0) target = $region5
    $region4: #{tpu_custom_call.1} parent=1 // pred_region
      %s13 = ssub.s32 256, 256
      %14 = vsyncadd [#allocation3], %s13
      %s15 = sshll.u32 [#allocation2], 4
      %s16 = int_to_ptr.vmem [resolvable:$true] %s15
      %21 = dma.hbm_to_vmem [thread:$0]  %s0, 256, %s16, [#allocation3], 128, 128, 8
    $region5: #{tpu_custom_call.1} parent=1 // pred_fallthru
      _
    // Predicated region
    $region6: #{tpu_custom_call.1} parent=1 // pred_check
      _
    $region7: #{tpu_custom_call.1} parent=1 // pred_check_branch
      %23 = sbr.rel (0) target = $region9
    $region8: #{tpu_custom_call.1} parent=1 // pred_region
      %s25 = ssub.s32 256, 256
      %26 = vsyncadd [#allocation6], %s25
      %s27 = sshll.u32 [#allocation5], 4
      %s28 = int_to_ptr.vmem [resolvable:$true] %s27
      %33 = dma.hbm_to_vmem [thread:$0]  %s1, 256, %s28, [#allocation6], 128, 128, 8
    $region9: #{tpu_custom_call.1} parent=1 // pred_fallthru
      _
    // Predicated region
    $region10: #{tpu_custom_call.1} parent=1 // pred_check
      _
    $region11: #{tpu_custom_call.1} parent=1 // pred_check_branch
      %35 = sbr.rel (0) target = $region13
    $region12: #{tpu_custom_call.1} parent=1 // pred_region
      %36 = dma.done [#allocation3], 256
    $region13: #{tpu_custom_call.1} parent=1 // pred_fallthru
      _
    // Predicated region
    $region14: #{tpu_custom_call.1} parent=1 // pred_check
      _
    $region15: #{tpu_custom_call.1} parent=1 // pred_check_branch
      %38 = sbr.rel (0) target = $region17
    $region16: #{tpu_custom_call.1} parent=1 // pred_region
      %39 = dma.done [#allocation6], 256
    $region17: #{tpu_custom_call.1} parent=1 // pred_fallthru
      _
    %p40 = scmp.eq.s32.totalorder 0, 0
    // Predicated region
    $region18: #{tpu_custom_call.1} parent=1 // pred_check
      %p41 = pneg %p40
    $region19: #{tpu_custom_call.1} parent=1 // pred_check_branch
      %43 = sbr.rel (%p41) target = $region21
    $region20: #{tpu_custom_call.1} parent=1 // pred_region
      %44 = vst [vmem:[#allocation7] sm:$0xff] 0.0
    $region21: #{tpu_custom_call.1} parent=1 // pred_fallthru
      _
    %v45 = vld [vmem:[#allocation2] sm:$0xff]
    %v46 = vld [vmem:[#allocation2 + $0x8] sm:$0xff]
    %v47 = vld [vmem:[#allocation5] sm:$0xff]
    %v48 = vld [vmem:[#allocation5 + $0x8] sm:$0xff]
    %v49 = vsub.f32 %v45, %v47
    %v50 = vsub.f32 %v46, %v48
    %v51 = vand.u32 2147483647, %v49
    %v52 = vand.u32 2147483647, %v50
    %v53 = vld [vmem:[#allocation7] sm:$0xff]
    %v54 = vadd.f32 %v51, %v52
    %v55 = vadd.f32 %v53, %v54
    %56 = vst [vmem:[#allocation7] sm:$0xff] %v55
    // Predicated region
    $region22: #{tpu_custom_call.1} parent=1 // pred_check
      _
    $region23: #{tpu_custom_call.1} parent=1 // pred_check_branch
      %58 = sbr.rel (0) target = $region25
    $region24: #{tpu_custom_call.1} parent=1 // pred_region
      %s60 = ssub.s32 128, 128
      %61 = vsyncadd [#allocation4], %s60
      %s63 = sshll.u32 [#allocation7], 4
      %s64 = int_to_ptr.vmem [resolvable:$true] %s63
      %66 = dma.vmem_to_hbm [thread:$0]  %s64, 128, %s2, [#allocation4]
    $region25: #{tpu_custom_call.1} parent=1 // pred_fallthru
      _
    // Predicated region
    $region26: #{tpu_custom_call.1} parent=1 // pred_check
      _
    $region27: #{tpu_custom_call.1} parent=1 // pred_check_branch
      %68 = sbr.rel (0) target = $region29
    $region28: #{tpu_custom_call.1} parent=1 // pred_region
      %69 = dma.done [#allocation4], 128
    $region29: #{tpu_custom_call.1} parent=1 // pred_fallthru
      _
    %70 = vsyncpa [#allocation3], 1
    %71 = vsyncpa [#allocation6], 1
    %72 = vsyncpa [#allocation4], 1

</llo_original>
